<compile_context>
chip_gen: v6e
topology: v6e:2x2x1
jax: 0.10.0
libtpu: 0.0.40
codegen_flags: <defaults>
</compile_context>

<pallas_src>
import math

import jax
import jax.numpy as jnp
from jax.experimental import pallas as pl
from jax.experimental.pallas import tpu as pltpu

_SUBLANE = 8
_LANE = 128
_MIB = 1024 * 1024
# Residency plan budget (conservative for v7x: 64 MiB physical per TC).
_RESIDENT_VMEM_BUDGET = 32 * _MIB
# Scoped VMEM limit handed to Mosaic (above the 16/32 MiB defaults, below
# v7x's 64 MiB physical).
_VMEM_LIMIT_BYTES = 48 * _MIB


def _round_up(x, m):
    return ((x + m - 1) // m) * m


def _cdiv(a, b):
    return -(-a // b)


def _pick_tile(dim, max_tile, align):
    """Tile <= max_tile, multiple of `align`, preferring divisors of the
    (align-rounded) dim so the big operands need no jnp.pad."""
    dp = _round_up(max(dim, 1), align)
    t = min(max_tile, dp)
    t = max(align, (t // align) * align)
    if dp % t == 0:
        return t
    lo = max(t // 2, align)
    for cand in range(t, lo - 1, -align):
        if dp % cand == 0:
            return cand
    return t  # accept a little padding rather than a tiny tile


# ---------------------------------------------------------------------------
# Kernels
# ---------------------------------------------------------------------------

def _mm_resident_kernel(a_ref, b_ref, o_ref):
    # B is fully VMEM-resident (constant block index); one dot per row block.
    o_ref[...] = jnp.dot(a_ref[...], b_ref[...],
                         preferred_element_type=jnp.float32).astype(o_ref.dtype)


def _mm_resident_bias_kernel(a_ref, b_ref, bias_ref, o_ref):
    acc = jnp.dot(a_ref[...], b_ref[...], preferred_element_type=jnp.float32)
    o_ref[...] = (acc + bias_ref[...].astype(jnp.float32)).astype(o_ref.dtype)


def _mm_tiled_f32out_kernel(a_ref, b_ref, o_ref):
    # f32 output: accumulate directly into the (k-invariant) output block.
    @pl.when(pl.program_id(2) == 0)
    def _():
        o_ref[...] = jnp.zeros_like(o_ref)

    o_ref[...] += jnp.dot(a_ref[...], b_ref[...],
                          preferred_element_type=jnp.float32)


def _mm_tiled_bias_f32out_kernel(a_ref, b_ref, bias_ref, o_ref):
    @pl.when(pl.program_id(2) == 0)
    def _():
        o_ref[...] = jnp.broadcast_to(bias_ref[...].astype(jnp.float32),
                                      o_ref.shape)

    o_ref[...] += jnp.dot(a_ref[...], b_ref[...],
                          preferred_element_type=jnp.float32)


def _mm_tiled_acc_kernel(a_ref, b_ref, o_ref, acc_ref):
    # Non-f32 output (e.g. bf16 intermediate): f32 scratch accumulator.
    @pl.when(pl.program_id(2) == 0)
    def _():
        acc_ref[...] = jnp.zeros_like(acc_ref)

    acc_ref[...] += jnp.dot(a_ref[...], b_ref[...],
                            preferred_element_type=jnp.float32)

    @pl.when(pl.program_id(2) == pl.num_programs(2) - 1)
    def _():
        o_ref[...] = acc_ref[...].astype(o_ref.dtype)


def _mm_tiled_bias_acc_kernel(a_ref, b_ref, bias_ref, o_ref, acc_ref):
    @pl.when(pl.program_id(2) == 0)
    def _():
        acc_ref[...] = jnp.broadcast_to(bias_ref[...].astype(jnp.float32),
                                        acc_ref.shape)

    acc_ref[...] += jnp.dot(a_ref[...], b_ref[...],
                            preferred_element_type=jnp.float32)

    @pl.when(pl.program_id(2) == pl.num_programs(2) - 1)
    def _():
        o_ref[...] = acc_ref[...].astype(o_ref.dtype)


# ---------------------------------------------------------------------------
# Matmul wrapper
# ---------------------------------------------------------------------------

def _pallas_matmul(a, b, bias=None, *, out_dtype=None, tm=512, tn=512, tk=512):
    """out = a @ b (+ bias). Picks a resident-B plan when it fits VMEM, else a
    tiled (rows, cols, reduction) plan."""
    M, K = a.shape
    K2, N = b.shape
    assert K == K2, (a.shape, b.shape)
    if out_dtype is None:
        out_dtype = jnp.promote_types(a.dtype, b.dtype)
    out_dtype = jnp.dtype(out_dtype)
    a_item = jnp.dtype(a.dtype).itemsize
    b_item = jnp.dtype(b.dtype).itemsize
    o_item = out_dtype.itemsize

    # Row tile: multiple of 8, capped so there are >= 2 row blocks whenever
    # possible (keeps both v7x TensorCores busy under "parallel" semantics).
    m_al = _round_up(M, _SUBLANE)
    tm_cap = max(_SUBLANE, min(tm, _round_up(_cdiv(m_al, 2), _SUBLANE)))
    TM = _pick_tile(M, tm_cap, _SUBLANE)

    kp_al = _round_up(K, _LANE)
    np_al = _round_up(N, _LANE)

    # ---- Path A: RHS fully VMEM-resident --------------------------------
    resident_bytes = (2 * kp_al * np_al * b_item      # B (worst case 2 buffers)
                      + 2 * TM * kp_al * a_item       # A row stripe, dbl-buffered
                      + 2 * TM * np_al * o_item)      # output tile, dbl-buffered
    if bias is not None:
        resident_bytes += 2 * np_al * 4
    use_resident = resident_bytes <= _RESIDENT_VMEM_BUDGET

    if use_resident:
        Mp, Kp, Np = _round_up(M, TM), kp_al, np_al
        a_p = a if (Mp == M and Kp == K) else jnp.pad(a, ((0, Mp - M), (0, Kp - K)))
        b_p = b if (Kp == K and Np == N) else jnp.pad(b, ((0, Kp - K), (0, Np - N)))
        grid = (Mp // TM,)
        in_specs = [
            pl.BlockSpec((TM, Kp), lambda i: (i, 0)),
            pl.BlockSpec((Kp, Np), lambda i: (0, 0)),   # constant index -> loaded once
        ]
        out_spec = pl.BlockSpec((TM, Np), lambda i: (i, 0))
        operands = [a_p, b_p]
        kernel = _mm_resident_kernel
        if bias is not None:
            bias2d = bias.reshape(1, N).astype(jnp.float32)
            bias_p = bias2d if Np == N else jnp.pad(bias2d, ((0, 0), (0, Np - N)))
            in_specs.append(pl.BlockSpec((1, Np), lambda i: (0, 0)))
            operands.append(bias_p)
            kernel = _mm_resident_bias_kernel
        scratch = []
        dims = ("parallel",)

    # ---- Path B: tiled (i, j, k) with k-innermost reduction --------------
    else:
        TK = _pick_tile(K, tk, _LANE)
        TN = _pick_tile(N, tn, _LANE)
        Mp, Kp, Np = _round_up(M, TM), _round_up(K, TK), _round_up(N, TN)
        a_p = a if (Mp == M and Kp == K) else jnp.pad(a, ((0, Mp - M), (0, Kp - K)))
        b_p = b if (Kp == K and Np == N) else jnp.pad(b, ((0, Kp - K), (0, Np - N)))
        grid = (Mp // TM, Np // TN, Kp // TK)
        in_specs = [
            pl.BlockSpec((TM, TK), lambda i, j, k: (i, k)),
            pl.BlockSpec((TK, TN), lambda i, j, k: (k, j)),
        ]
        out_spec = pl.BlockSpec((TM, TN), lambda i, j, k: (i, j))
        operands = [a_p, b_p]
        f32_out = out_dtype == jnp.dtype(jnp.float32)
        if bias is not None:
            bias2d = bias.reshape(1, N).astype(jnp.float32)
            bias_p = bias2d if Np == N else jnp.pad(bias2d, ((0, 0), (0, Np - N)))
            in_specs.append(pl.BlockSpec((1, TN), lambda i, j, k: (0, j)))
            operands.append(bias_p)
            kernel = _mm_tiled_bias_f32out_kernel if f32_out else _mm_tiled_bias_acc_kernel
        else:
            kernel = _mm_tiled_f32out_kernel if f32_out else _mm_tiled_acc_kernel
        scratch = [] if f32_out else [pltpu.VMEM((TM, TN), jnp.float32)]
        dims = ("parallel", "parallel", "arbitrary")
        # TODO(synk): on v5e, pipeline_mode=pl.Buffered(3) on the streamed LHS
        # (adj) tiles may help if profiles show exposed DMA.

    cost = pl.CostEstimate(
        flops=2 * Mp * Np * Kp,
        transcendentals=0,
        bytes_accessed=Mp * Kp * a_item + Kp * Np * b_item + Mp * Np * o_item,
    )

    out = pl.pallas_call(
        kernel,
        out_shape=jax.ShapeDtypeStruct((Mp, Np), out_dtype),
        grid_spec=pltpu.PrefetchScalarGridSpec(
            num_scalar_prefetch=0,
            grid=grid,
            in_specs=in_specs,
            out_specs=out_spec,
            scratch_shapes=scratch,
        ),
        compiler_params=pltpu.CompilerParams(
            dimension_semantics=dims,
            vmem_limit_bytes=_VMEM_LIMIT_BYTES,
        ),
        cost_estimate=cost,
    )(*operands)

    if Mp != M or Np != N:
        out = out[:M, :N]
    return out


# ---------------------------------------------------------------------------
# GCN layer forward
# ---------------------------------------------------------------------------

def graph_convolution(x, adj, weight, bias=None, *, use_bf16=True,
                      tm=512, tn=512, tk=512):
    """Pallas GCN forward.  x: [N, F_in], adj: [N, N], weight: [F_in, F_out]."""
    out_dtype = jnp.promote_types(x.dtype, weight.dtype)
    compute_dtype = jnp.bfloat16 if use_bf16 else out_dtype

    xc = x.astype(compute_dtype)
    adjc = adj.astype(compute_dtype)
    wc = weight.astype(compute_dtype)
    f_in, f_out = weight.shape

    # Put the small feature dim on the N^2 matmul: adj @ (X @ W) when
    # F_out <= F_in, (adj @ X) @ W otherwise.  Intermediate stays in
    # compute_dtype (bf16) to halve its HBM round-trip; final output is f32.
    if f_out <= f_in:
        support = _pallas_matmul(xc, wc, out_dtype=compute_dtype,
                                 tm=tm, tn=tn, tk=tk)
        out = _pallas_matmul(adjc, support, bias=bias, out_dtype=out_dtype,
                             tm=tm, tn=tn, tk=tk)
    else:
        ax = _pallas_matmul(adjc, xc, out_dtype=compute_dtype,
                            tm=tm, tn=tn, tk=tk)
        out = _pallas_matmul(ax, wc, bias=bias, out_dtype=out_dtype,
                             tm=tm, tn=tn, tk=tk)
    return out


def init_gcn_params(key, in_features, out_features, bias=False, dtype=jnp.float32):
    """Matches GraphConvolution.reset_parameters: U(-stdv, stdv), stdv = 1/sqrt(F_out)."""
    stdv = 1.0 / math.sqrt(out_features)
    k_w, k_b = jax.random.split(key)
    weight = jax.random.uniform(
        k_w, (in_features, out_features), dtype=dtype, minval=-stdv, maxval=stdv)
    b = None
    if bias:
        b = jax.random.uniform(
            k_b, (out_features,), dtype=dtype, minval=-stdv, maxval=stdv)
    return weight, b


if __name__ == "__main__":
    key = jax.random.PRNGKey(0)
    k_x, k_adj, k_p1, k_p2 = jax.random.split(key, 4)

    N = 64
    F_IN = 96
    F_OUT = 32   # F_out <= F_in -> adj @ (X @ W) association

    x = jax.random.normal(k_x, (N, F_IN), dtype=jnp.float32)
    adj_raw = jax.random.uniform(k_adj, (N, N), dtype=jnp.float32)
    adj = adj_raw / jnp.sum(adj_raw, axis=-1, keepdims=True)  # row-normalized adjacency

    weight, _ = init_gcn_params(k_p1, F_IN, F_OUT, bias=False)
    ref = adj @ (x @ weight)

    # Exact (f32) path — bit-level correctness of the kernel structure.
    out_f32 = jax.block_until_ready(graph_convolution(x, adj, weight, use_bf16=False))
    assert out_f32.shape == (N, F_OUT)
    assert jnp.allclose(out_f32, ref, atol=1e-5, rtol=1e-5)

    # Fast bf16 path (f32 accumulation) — looser tolerance.
    out_bf = jax.block_until_ready(graph_convolution(x, adj, weight, use_bf16=True))
    assert out_bf.shape == (N, F_OUT)
    assert jnp.allclose(out_bf, ref, atol=3e-2, rtol=3e-2)

    # bias=True and F_in < F_out (exercises the (adj @ X) @ W association).
    F_IN2, F_OUT2 = 32, 128
    x2 = jax.random.normal(k_x, (N, F_IN2), dtype=jnp.float32)
    weight2, bias2 = init_gcn_params(k_p2, F_IN2, F_OUT2, bias=True)
    ref2 = adj @ (x2 @ weight2) + bias2
    out2 = jax.block_until_ready(graph_convolution(x2, adj, weight2, bias2, use_bf16=True))
    assert out2.shape == (N, F_OUT2)
    assert jnp.allclose(out2, ref2, atol=3e-2, rtol=3e-2)

    print("KERNEL_OK")
</pallas_src>

<mosaic_0001>
module attributes {stable_mosaic.version = 11 : i64} {
  func.func @_mm_resident_kernel(%arg0: i32, %arg1: memref<32x128xf32, #tpu.memory_space<vmem>>, %arg2: memref<128x128xf32, #tpu.memory_space<vmem>>, %arg3: memref<32x128xf32, #tpu.memory_space<vmem>>) attributes {dimension_semantics = [#tpu.dimension_semantics<parallel>], iteration_bounds = array<i64: 2>, scalar_prefetch = 0 : i64, scratch_operands = 0 : i64, tpu.core_type = #tpu.core_type<tc>, window_params = [{transform_indices = @transform_0, window_bounds = array<i64: 32, 128>}, {pipeline_mode = #tpu.pipeline_mode<synchronous>, transform_indices = @transform_1, window_bounds = array<i64: 128, 128>}, {transform_indices = @transform_2, window_bounds = array<i64: 32, 128>}]} {
    %c0 = arith.constant 0 : index
    %c0_0 = arith.constant 0 : index
    %0 = vector.load %arg1[%c0, %c0_0] : memref<32x128xf32, #tpu.memory_space<vmem>>, vector<32x128xf32>
    %c0_1 = arith.constant 0 : index
    %c0_2 = arith.constant 0 : index
    %1 = vector.load %arg2[%c0_1, %c0_2] : memref<128x128xf32, #tpu.memory_space<vmem>>, vector<128x128xf32>
    %cst = arith.constant dense<0.000000e+00> : vector<32x128xf32>
    %2 = tpu.matmul %0, %1, %cst {dimension_numbers = #tpu.dot_dimension_numbers<[1], [0], [0], [1], [0, 0, 1, 1], [], []>} : vector<32x128xf32>, vector<128x128xf32>, vector<32x128xf32> -> vector<32x128xf32>
    %c0_3 = arith.constant 0 : index
    %c0_4 = arith.constant 0 : index
    %3 = vector.load %arg3[%c0_3, %c0_4] : memref<32x128xf32, #tpu.memory_space<vmem>>, vector<32x128xf32>
    tpu.vector_store %arg3[%c0_3, %c0_4], %2 {strides = array<i32>} : memref<32x128xf32, #tpu.memory_space<vmem>>, vector<32x128xf32>,
    return
  }
  func.func @transform_0(%arg0: i32) -> (i32, i32) {
    %c0_i32 = arith.constant 0 : i32
    %c0_i32_0 = arith.constant 0 : i32
    return %arg0, %c0_i32 : i32, i32
  }
  func.func @transform_1(%arg0: i32) -> (i32, i32) {
    %c0_i32 = arith.constant 0 : i32
    %c0_i32_0 = arith.constant 0 : i32
    %c0_i32_1 = arith.constant 0 : i32
    return %c0_i32, %c0_i32_0 : i32, i32
  }
  func.func @transform_2(%arg0: i32) -> (i32, i32) {
    %c0_i32 = arith.constant 0 : i32
    %c0_i32_0 = arith.constant 0 : i32
    return %arg0, %c0_i32 : i32, i32
  }
}

</mosaic_0001>

<llo_original>
// kernel: tpu_custom_call.1
$region0: #{tpu_custom_call.1}
  #allocation0 [shape = 'u32[]', space=smem, size = 0x4, offset = 0x4, fixed_abs, tag = 'smem constant byte address 0x4 - core index']
  #allocation1 [shape = 'u32[144,128]{1,0:T(1,128)}', space=vmem, size = 0x12000, scoped, tag = 'internal scratch']
  %s0 = inlined_call_operand.hbm [shape: f32[64,128], index: 0, kind: input, shape index: {}]
  %s1 = inlined_call_operand.hbm [shape: f32[128,128], index: 1, kind: input, shape index: {}]
  %s2 = inlined_call_operand.hbm [shape: f32[64,128], index: 2, kind: output, shape index: {}]
  %s3 = sld [smem:[#allocation0]]
  $region49: #{tpu_custom_call.1} parent=0
    _
  %s5 = ssub.s32 1, %s3
  %s6 = scalar_select 0, %s5, %s3
  $region1: #{tpu_custom_call.1} parent=0
    #allocation2 [shape = 'u8[32768]{0}', space=vmem, size = 0x8000, scoped, tag = 'input window, operand 0']
    #allocation3 [shape = 's32[2]{0}', space=sflag, size = 0x8, scoped, tag = 'scoped memory for tpu_custom_call.1']
    #allocation4 [shape = 's32[2]{0}', space=sflag, size = 0x8, scoped, tag = 'scoped memory for tpu_custom_call.1']
    #allocation5 [shape = 'u8[65536]{0}', space=vmem, size = 0x10000, scoped, tag = 'input window, operand 1, single buffered']
    #allocation6 [shape = 's32[1]{0}', space=sflag, size = 0x4, scoped, tag = 'scoped memory for tpu_custom_call.1']
    #allocation7 [shape = 'u8[32768]{0}', space=vmem, size = 0x8000, scoped, tag = 'output window, operand 0']
    %7 = vsyncpa [#allocation3], 0
    %s8 = scalar_lea.sflag [#allocation3], 1
    %9 = vsyncpa %s8, 0
    %10 = vsyncpa [#allocation6], 0
    %11 = vsyncpa [#allocation4], 0
    %s12 = scalar_lea.sflag [#allocation4], 1
    %13 = vsyncpa %s12, 0
    loop: start=0, step=1, limit=4
    $region2: #{tpu_custom_call.1} parent=1 // loop_pre_header
      _
    $region3: #{tpu_custom_call.1} parent=1 // loop_header
      %s15 = sphi 0, %s19
      %p16 = scmp.ge.s32.totalorder %s15, 4
      %s25 = sphi 0, %s27
      %s28 = sphi 0, %s25
      %s29 = sphi 0, %s28
      %s45 = sphi 0, %s29
      %s49 = sphi 0, %s49
      %s51 = sphi 0, %s49
      %s52 = sphi 0, %s51
      %s66 = sphi 0, %s52
      %s72 = sphi 0, %s74
      %s75 = sphi 0, %s72
      %s76 = sphi 0, %s75
      %s92 = sphi 0, %s76
    $region4: #{tpu_custom_call.1} parent=1 // loop_header_branch
      %18 = sbr.rel (%p16) target = $region8
    $region5: #{tpu_custom_call.1} parent=1 // loop_body
      %s20 = ssub.s32 %s15, 1
      %s21 = ssub.s32 %s15, 2
      %s22 = sadd.s32 %s15, 1
      %s23 = ssub.s32 %s15, %s22
      %p24 = scmp.eq.s32.totalorder %s23, 0
      %s26 = sadd.s32 %s25, 1
      %s27 = scalar_select %p24, %s25, %s26
      %p30 = pneg %p24
      %p31 = scmp.eq.s32.totalorder %s15, 1
      %p32 = por %p30, %p31
      %p33 = scmp.ne.s32.totalorder %s25, %s28
      %p34 = scmp.eq.s32.totalorder %s15, 0
      %p35 = por %p33, %p34
      %p36 = scmp.ne.s32.totalorder %s25, %s28
      %p37 = scmp.eq.s32.totalorder %s20, 1
      %p38 = por %p36, %p37
      %p39 = scmp.ne.s32.totalorder %s28, %s29
      %p40 = scmp.eq.s32.totalorder %s20, 0
      %p41 = por %p39, %p40
      %p42 = scmp.ne.s32.totalorder %s28, %s29
      %p43 = scmp.eq.s32.totalorder %s21, 1
      %p44 = por %p42, %p43
      %p46 = scmp.ne.s32.totalorder %s29, %s45
      %p47 = scmp.eq.s32.totalorder %s21, 0
      %p48 = por %p46, %p47
      %s50 = sadd.s32 %s49, 1
      %p53 = scmp.eq.s32.totalorder %s15, 1
      %p54 = scmp.ne.s32.totalorder %s49, %s51
      %p55 = scmp.eq.s32.totalorder %s15, 0
      %p56 = por %p54, %p55
      %p57 = scmp.ne.s32.totalorder %s49, %s51
      %p58 = scmp.eq.s32.totalorder %s20, 1
      %p59 = por %p57, %p58
      %p60 = scmp.ne.s32.totalorder %s51, %s52
      %p61 = scmp.eq.s32.totalorder %s20, 0
      %p62 = por %p60, %p61
      %p63 = scmp.ne.s32.totalorder %s51, %s52
      %p64 = scmp.eq.s32.totalorder %s21, 1
      %p65 = por %p63, %p64
      %p67 = scmp.ne.s32.totalorder %s52, %s66
      %p68 = scmp.eq.s32.totalorder %s21, 0
      %p69 = por %p67, %p68
      %s70 = ssub.s32 %s15, %s22
      %p71 = scmp.eq.s32.totalorder %s70, 0
      %s73 = sadd.s32 %s72, 1
      %s74 = scalar_select %p71, %s72, %s73
      %p77 = pneg %p71
      %p78 = scmp.eq.s32.totalorder %s15, 1
      %p79 = por %p77, %p78
      %p80 = scmp.ne.s32.totalorder %s72, %s75
      %p81 = scmp.eq.s32.totalorder %s15, 0
      %p82 = por %p80, %p81
      %p83 = scmp.ne.s32.totalorder %s72, %s75
      %p84 = scmp.eq.s32.totalorder %s20, 1
      %p85 = por %p83, %p84
      %p86 = scmp.ne.s32.totalorder %s75, %s76
      %p87 = scmp.eq.s32.totalorder %s20, 0
      %p88 = por %p86, %p87
      %p89 = scmp.ne.s32.totalorder %s75, %s76
      %p90 = scmp.eq.s32.totalorder %s21, 1
      %p91 = por %p89, %p90
      %p93 = scmp.ne.s32.totalorder %s76, %s92
      %p94 = scmp.eq.s32.totalorder %s21, 0
      %p95 = por %p93, %p94
      %p96 = scmp.le.s32.totalorder 1, %s15
      %p97 = scmp.lt.s32.totalorder %s15, 3
      %p98 = pnand %p96, %p97
      %p99 = pneg %p98
      // Predicated region
      $region9: #{tpu_custom_call.1} parent=5 // pred_check
        _
      $region10: #{tpu_custom_call.1} parent=5 // pred_check_branch
        %101 = sbr.rel (%p98) target = $region12
      $region11: #{tpu_custom_call.1} parent=5 // pred_region
        %s102 = ssub.s32 %s15, 1
        // Predicated region
        $region13: #{tpu_custom_call.1} parent=11 // pred_check
          %p103 = pneg %p62
        $region14: #{tpu_custom_call.1} parent=11 // pred_check_branch
          %105 = sbr.rel (%p103) target = $region16
        $region15: #{tpu_custom_call.1} parent=11 // pred_region
          %s107 = ssub.s32 2048, 2048
          %108 = vsyncadd [#allocation6], %s107
          %s109 = sshll.u32 [#allocation5], 4
          %s110 = int_to_ptr.vmem [resolvable:$true] %s109
          %115 = dma.hbm_to_vmem [thread:$0]  %s1, 2048, %s110, [#allocation6], 128, 128, 8
        $region16: #{tpu_custom_call.1} parent=11 // pred_fallthru
          _
      $region12: #{tpu_custom_call.1} parent=5 // pred_fallthru
        _
      %p116 = scmp.lt.s32.totalorder %s15, 2
      // Predicated region
      $region17: #{tpu_custom_call.1} parent=5 // pred_check
        %p117 = pneg %p116
      $region18: #{tpu_custom_call.1} parent=5 // pred_check_branch
        %119 = sbr.rel (%p117) target = $region20
      $region19: #{tpu_custom_call.1} parent=5 // pred_region
        // Predicated region
        $region21: #{tpu_custom_call.1} parent=19 // pred_check
          %p120 = pneg %p35
        $region22: #{tpu_custom_call.1} parent=19 // pred_check_branch
          %122 = sbr.rel (%p120) target = $region24
        $region23: #{tpu_custom_call.1} parent=19 // pred_region
          %s123 = sand.u32 %s25, 1
          %s124 = scalar_lea.sflag [#allocation3], %s123
          %s125 = sand.u32 %s25, 1
          %s126 = smul.addr %s125, 32
          %s127 = scalar_lea.vmem [#allocation2], %s126
          %s128 = smul.u32 4, %s15
          %s130 = ssub.s32 512, 512
          %131 = vsyncadd %s124, %s130
          %s132 = smul.addr %s128, 128
          %s133 = scalar_lea.hbm %s0, %s132
          %s134 = sshll.u32 %s127, 4
          %s135 = int_to_ptr.vmem [resolvable:$true] %s134
          %140 = dma.hbm_to_vmem [thread:$0]  %s133, 512, %s135, %s124, 128, 128, 8
        $region24: #{tpu_custom_call.1} parent=19 // pred_fallthru
          _
      $region20: #{tpu_custom_call.1} parent=5 // pred_fallthru
        _
      %p141 = scmp.le.s32.totalorder 1, %s15
      %p142 = scmp.lt.s32.totalorder %s15, 3
      %p143 = pnand %p141, %p142
      %p144 = pneg %p143
      // Predicated region
      $region25: #{tpu_custom_call.1} parent=5 // pred_check
        _
      $region26: #{tpu_custom_call.1} parent=5 // pred_check_branch
        %146 = sbr.rel (%p143) target = $region28
      $region27: #{tpu_custom_call.1} parent=5 // pred_region
        %s147 = ssub.s32 %s15, 1
        %s148 = sand.u32 %s28, 1
        %s149 = scalar_lea.sflag [#allocation3], %s148
        %s150 = sand.u32 %s28, 1
        %s151 = smul.addr %s150, 32
        %s152 = scalar_lea.vmem [#allocation2], %s151
        // Predicated region
        $region29: #{tpu_custom_call.1} parent=27 // pred_check
          %p153 = pneg %p41
        $region30: #{tpu_custom_call.1} parent=27 // pred_check_branch
          %155 = sbr.rel (%p153) target = $region32
        $region31: #{tpu_custom_call.1} parent=27 // pred_region
          %156 = dma.done %s149, 512
        $region32: #{tpu_custom_call.1} parent=27 // pred_fallthru
          _
        // Predicated region
        $region33: #{tpu_custom_call.1} parent=27 // pred_check
          %p157 = pneg %p62
        $region34: #{tpu_custom_call.1} parent=27 // pred_check_branch
          %159 = sbr.rel (%p157) target = $region36
        $region35: #{tpu_custom_call.1} parent=27 // pred_region
          %160 = dma.done [#allocation6], 2048
        $region36: #{tpu_custom_call.1} parent=27 // pred_fallthru
          _
        %s161 = sand.u32 %s28, 1
        %s162 = scalar_lea.sflag [#allocation3], %s161
        %s163 = sand.u32 %s28, 1
        %s164 = smul.addr %s163, 32
        %s165 = scalar_lea.vmem [#allocation2], %s164
        %p166 = pneg %p41
        %p167 = pneg %p38
        %p168 = pneg %p62
        %p169 = pneg %p59
        %p170 = pneg %p88
        %p171 = pneg %p85
        %s172 = sand.u32 %s75, 1
        %s173 = scalar_lea.sflag [#allocation4], %s172
        %s174 = sand.u32 %s75, 1
        %s175 = smul.addr %s174, 32
        %s176 = scalar_lea.vmem [#allocation7], %s175
        %s177 = smul.u32 4, %s20
        %s178 = smul.u32 4, %s20
        %v179 = vld [vmem:[%s152] sm:$0xff]
        %v180 = vld [vmem:[%s152 + $0x8] sm:$0xff]
        %v181 = vld [vmem:[%s152 + $0x10] sm:$0xff]
        %v182 = vld [vmem:[%s152 + $0x18] sm:$0xff]
        %v183 = vld [vmem:[#allocation5] sm:$0xff]
        %v184 = vld [vmem:[#allocation5 + $0x8] sm:$0xff]
        %v185 = vld [vmem:[#allocation5 + $0x10] sm:$0xff]
        %v186 = vld [vmem:[#allocation5 + $0x18] sm:$0xff]
        %v187 = vld [vmem:[#allocation5 + $0x20] sm:$0xff]
        %v188 = vld [vmem:[#allocation5 + $0x28] sm:$0xff]
        %v189 = vld [vmem:[#allocation5 + $0x30] sm:$0xff]
        %v190 = vld [vmem:[#allocation5 + $0x38] sm:$0xff]
        %v191 = vld [vmem:[#allocation5 + $0x40] sm:$0xff]
        %v192 = vld [vmem:[#allocation5 + $0x48] sm:$0xff]
        %v193 = vld [vmem:[#allocation5 + $0x50] sm:$0xff]
        %v194 = vld [vmem:[#allocation5 + $0x58] sm:$0xff]
        %v195 = vld [vmem:[#allocation5 + $0x60] sm:$0xff]
        %v196 = vld [vmem:[#allocation5 + $0x68] sm:$0xff]
        %v197 = vld [vmem:[#allocation5 + $0x70] sm:$0xff]
        %v198 = vld [vmem:[#allocation5 + $0x78] sm:$0xff]
        %199 = vmatprep.subr.mxu0 0.0
        %200 = vmatpush1.msra.mxu0 %v198
        %201 = vmatprep.subr.mxu0 0.0
        %202 = vmatpush1.msra.mxu0 %v197
        %203 = vmatprep.subr.mxu0 0.0
        %204 = vmatpush1.msra.mxu0 %v196
        %205 = vmatprep.subr.mxu0 0.0
        %206 = vmatpush1.msra.mxu0 %v195
        %207 = vmatprep.subr.mxu0 0.0
        %208 = vmatpush1.msra.mxu0 %v194
        %209 = vmatprep.subr.mxu0 0.0
        %210 = vmatpush1.msra.mxu0 %v193
        %211 = vmatprep.subr.mxu0 0.0
        %212 = vmatpush1.msra.mxu0 %v192
        %213 = vmatprep.subr.mxu0 0.0
        %214 = vmatpush1.msra.mxu0 %v191
        %215 = vmatprep.subr.mxu0 0.0
        %216 = vmatpush1.msra.mxu0 %v190
        %217 = vmatprep.subr.mxu0 0.0
        %218 = vmatpush1.msra.mxu0 %v189
        %219 = vmatprep.subr.mxu0 0.0
        %220 = vmatpush1.msra.mxu0 %v188
        %221 = vmatprep.subr.mxu0 0.0
        %222 = vmatpush1.msra.mxu0 %v187
        %223 = vmatprep.subr.mxu0 0.0
        %224 = vmatpush1.msra.mxu0 %v186
        %225 = vmatprep.subr.mxu0 0.0
        %226 = vmatpush1.msra.mxu0 %v185
        %227 = vmatprep.subr.mxu0 0.0
        %228 = vmatpush1.msra.mxu0 %v184
        %229 = vmatprep.subr.mxu0 0.0
        %230 = vmatpush1.msra.mxu0 %v183
        %231 = vmatprep.subr.mxu0 0.0
        %232 = vmatpush2.msra.mxu0 0.0
        %233 = vmatprep.subr.mxu0 0.0
        %234 = vmatpush2.msra.mxu0 0.0
        %235 = vmatprep.subr.mxu0 0.0
        %236 = vmatpush2.msra.mxu0 0.0
        %237 = vmatprep.subr.mxu0 0.0
        %238 = vmatpush2.msra.mxu0 0.0
        %239 = vmatprep.subr.mxu0 0.0
        %240 = vmatpush2.msra.mxu0 0.0
        %241 = vmatprep.subr.mxu0 0.0
        %242 = vmatpush2.msra.mxu0 0.0
        %243 = vmatprep.subr.mxu0 0.0
        %244 = vmatpush2.msra.mxu0 0.0
        %245 = vmatprep.subr.mxu0 0.0
        %246 = vmatpush2.msra.mxu0 0.0
        %247 = vmatprep.subr.mxu0 0.0
        %248 = vmatpush2.msra.mxu0 0.0
        %249 = vmatprep.subr.mxu0 0.0
        %250 = vmatpush2.msra.mxu0 0.0
        %251 = vmatprep.subr.mxu0 0.0
        %252 = vmatpush2.msra.mxu0 0.0
        %253 = vmatprep.subr.mxu0 0.0
        %254 = vmatpush2.msra.mxu0 0.0
        %255 = vmatprep.subr.mxu0 0.0
        %256 = vmatpush2.msra.mxu0 0.0
        %257 = vmatprep.subr.mxu0 0.0
        %258 = vmatpush2.msra.mxu0 0.0
        %259 = vmatprep.subr.mxu0 0.0
        %260 = vmatpush2.msra.mxu0 0.0
        %261 = vmatprep.subr.mxu0 0.0
        %262 = vmatpush2.msra.mxu0 0.0
        %263 = vmatprep.mubr.f32.mxu0 0.0
        %264 = vmatmul.mubr.f32.gmra.mxu0 %v179
        %v265 = vpop.f32.mrf.mxu0
        %v266 = vadd.f32 0.0, %v265
        %v267 = vpop.f32.mrf.mxu0
        %268 = vmatprep.mubr.f32.mxu0 0.0
        %269 = vmatmul.mubr.f32.gmra.mxu0 %v180
        %v270 = vpop.f32.mrf.mxu0
        %v271 = vadd.f32 0.0, %v270
        %v272 = vpop.f32.mrf.mxu0
        %273 = vmatprep.mubr.f32.mxu0 0.0
        %274 = vmatmul.mubr.f32.gmra.mxu0 %v181
        %v275 = vpop.f32.mrf.mxu0
        %v276 = vadd.f32 0.0, %v275
        %v277 = vpop.f32.mrf.mxu0
        %278 = vmatprep.mubr.f32.mxu0 0.0
        %279 = vmatmul.mubr.f32.gmra.mxu0 %v182
        %v280 = vpop.f32.mrf.mxu0
        %v281 = vadd.f32 0.0, %v280
        %v282 = vpop.f32.mrf.mxu0
        %283 = vdwg.mxu0
        %284 = vst [vmem:[%s176] sm:$0xff] %v266
        %285 = vst [vmem:[%s176 + $0x8] sm:$0xff] %v271
        %286 = vst [vmem:[%s176 + $0x10] sm:$0xff] %v276
        %287 = vst [vmem:[%s176 + $0x18] sm:$0xff] %v281
        %s288 = sand.u32 %s75, 1
        %s289 = scalar_lea.sflag [#allocation4], %s288
        %s290 = sand.u32 %s75, 1
        %s291 = smul.addr %s290, 32
        %s292 = scalar_lea.vmem [#allocation7], %s291
        // Predicated region
        $region37: #{tpu_custom_call.1} parent=27 // pred_check
          %p293 = pneg %p85
        $region38: #{tpu_custom_call.1} parent=27 // pred_check_branch
          %295 = sbr.rel (%p293) target = $region40
        $region39: #{tpu_custom_call.1} parent=27 // pred_region
          %s296 = smul.u32 4, %s20
          %s298 = ssub.s32 512, 512
          %299 = vsyncadd %s289, %s298
          %s300 = smul.addr %s296, 128
          %s301 = scalar_lea.hbm %s2, %s300
          %s302 = sshll.u32 %s292, 4
          %s303 = int_to_ptr.vmem [resolvable:$true] %s302
          %308 = dma.vmem_to_hbm [thread:$0]  %s303, 512, %s301, %s289, 128, 128, 8
        $region40: #{tpu_custom_call.1} parent=27 // pred_fallthru
          _
      $region28: #{tpu_custom_call.1} parent=5 // pred_fallthru
        _
      %p309 = scmp.le.s32.totalorder 2, %s15
      // Predicated region
      $region41: #{tpu_custom_call.1} parent=5 // pred_check
        %p310 = pneg %p309
      $region42: #{tpu_custom_call.1} parent=5 // pred_check_branch
        %312 = sbr.rel (%p310) target = $region44
      $region43: #{tpu_custom_call.1} parent=5 // pred_region
        %s313 = ssub.s32 %s15, 2
        // Predicated region
        $region45: #{tpu_custom_call.1} parent=43 // pred_check
          %p314 = pneg %p91
        $region46: #{tpu_custom_call.1} parent=43 // pred_check_branch
          %316 = sbr.rel (%p314) target = $region48
        $region47: #{tpu_custom_call.1} parent=43 // pred_region
          %s317 = sand.u32 %s76, 1
          %s318 = scalar_lea.sflag [#allocation4], %s317
          %s319 = sand.u32 %s76, 1
          %s320 = smul.addr %s319, 32
          %s321 = scalar_lea.vmem [#allocation7], %s320
          %322 = dma.done %s318, 512
        $region48: #{tpu_custom_call.1} parent=43 // pred_fallthru
          _
      $region44: #{tpu_custom_call.1} parent=5 // pred_fallthru
        _
    $region6: #{tpu_custom_call.1} parent=1 // loop_footer
      %s19 = sadd.s32 1, %s15
    $region7: #{tpu_custom_call.1} parent=1 // loop_footer_branch
      %14 = sbr.rel target = $region3
    $region8: #{tpu_custom_call.1} parent=1 // loop_exit
      _
    %323 = vsyncpa [#allocation3], 1
    %s324 = scalar_lea.sflag [#allocation3], 1
    %325 = vsyncpa %s324, 1
    %326 = vsyncpa [#allocation6], 1
    %327 = vsyncpa [#allocation4], 1
    %s328 = scalar_lea.sflag [#allocation4], 1
    %329 = vsyncpa %s328, 1

</llo_original>
